<compile_context>
chip_gen: v7x
topology: tpu7x:2x2x1
jax: 0.10.0
libtpu: 0.0.40
codegen_flags: <defaults>
</compile_context>

<pallas_src>
import jax
import jax.numpy as jnp
from jax.experimental import pallas as pl
from jax.experimental.pallas import tpu as pltpu


_VMEM_LIMIT_BYTES = 32 * 1024 * 1024        # safe on v5e/v6e (128 MiB) and v7x (64 MiB)
_TARGET_BLOCK_BYTES = 2 * 1024 * 1024       # ~2 MiB per input block
_MAX_TILE_N = 2048


# ---------------------------------------------------------------------------
# Kernels
# ---------------------------------------------------------------------------
def _mse_none_kernel(p_ref, t_ref, o_ref):
    d = p_ref[...].astype(jnp.float32) - t_ref[...].astype(jnp.float32)
    o_ref[...] = (d * d).astype(o_ref.dtype)


def _mse_none_weighted_kernel(p_ref, t_ref, w_ref, o_ref):
    d = p_ref[...].astype(jnp.float32) - t_ref[...].astype(jnp.float32)
    w = w_ref[...].astype(jnp.float32)          # (tile_n, 1) broadcasts over D
    o_ref[...] = ((d * d) * w).astype(o_ref.dtype)


def _mse_partial_kernel(p_ref, t_ref, o_ref):
    """Per-tile partial sum of squared diff -> one f32 scalar in SMEM."""
    d = p_ref[...].astype(jnp.float32) - t_ref[...].astype(jnp.float32)
    o_ref[0, 0] = jnp.sum(d * d)


def _mse_partial_weighted_kernel(p_ref, t_ref, w_ref, o_ref):
    d = p_ref[...].astype(jnp.float32) - t_ref[...].astype(jnp.float32)
    sq = (d * d) * w_ref[...].astype(jnp.float32)
    o_ref[0, 0] = jnp.sum(sq)


# ---------------------------------------------------------------------------
# Tiling helper
# ---------------------------------------------------------------------------
def _choose_tile_n(N, D, itemsize):
    """Pick a row-tile: ~2 MiB per input block, multiple of 8, capped at 2048."""
    tile_n = _TARGET_BLOCK_BYTES // max(1, D * itemsize)
    tile_n = max(8, min(int(tile_n), _MAX_TILE_N))
    tile_n = (tile_n // 8) * 8
    n_pad8 = -(-N // 8) * 8                     # don't tile past the padded batch
    tile_n = min(tile_n, n_pad8)
    return max(8, tile_n)
    # TODO(synk): if D is extremely large (> ~512K f32 per row), also tile D
    # in multiples of 128 with a 2-D grid instead of relying on 8-row tiles.


def _compiler_params():
    return pltpu.CompilerParams(
        dimension_semantics=("parallel",),
        vmem_limit_bytes=_VMEM_LIMIT_BYTES,
    )


# ---------------------------------------------------------------------------
# Wrapper
# ---------------------------------------------------------------------------
class CustomMSELoss:
    def __init__(self, reduction="mean", weight=None):
        if reduction not in ("none", "sum", "mean"):
            raise ValueError(f"Invalid reduction method: {reduction}")
        self.reduction = reduction
        self.weight = weight  # jnp array of shape (N,) or None

    def __call__(self, predictions, targets):
        if predictions.shape != targets.shape:
            raise ValueError(
                f"Shape mismatch: predictions shape {predictions.shape} "
                f"!= targets shape {targets.shape}")
        N, D = predictions.shape
        itemsize = jnp.dtype(predictions.dtype).itemsize

        weighted = self.weight is not None
        if weighted:
            if self.weight.shape[0] != N:
                raise ValueError(
                    f"Weight tensor size {self.weight.shape[0]} != batch size {N}")
            w = self.weight.reshape(N, 1).astype(predictions.dtype)
        else:
            w = None

        # --- tiling + batch padding (arbitrary N supported) -----------------
        tile_n = _choose_tile_n(N, D, itemsize)
        n_tiles = -(-N // tile_n)
        N_pad = n_tiles * tile_n

        preds, targs = predictions, targets
        if N_pad != N:
            pad = ((0, N_pad - N), (0, 0))
            preds = jnp.pad(preds, pad)          # padded rows -> diff == 0
            targs = jnp.pad(targs, pad)
            if weighted:
                w = jnp.pad(w, pad)
        grid = (n_tiles,)

        pred_spec = pl.BlockSpec((tile_n, D), lambda i: (i, 0))
        targ_spec = pl.BlockSpec((tile_n, D), lambda i: (i, 0))
        w_spec = pl.BlockSpec((tile_n, 1), lambda i: (i, 0))

        # --- reduction == 'none' --------------------------------------------
        if self.reduction == "none":
            if weighted:
                kernel = _mse_none_weighted_kernel
                in_specs = [pred_spec, targ_spec, w_spec]
                args = (preds, targs, w)
            else:
                kernel = _mse_none_kernel
                in_specs = [pred_spec, targ_spec]
                args = (preds, targs)

            out = pl.pallas_call(
                kernel,
                out_shape=jax.ShapeDtypeStruct((N_pad, D), predictions.dtype),
                grid_spec=pltpu.PrefetchScalarGridSpec(
                    num_scalar_prefetch=0,
                    grid=grid,
                    in_specs=in_specs,
                    out_specs=pl.BlockSpec((tile_n, D), lambda i: (i, 0)),
                ),
                compiler_params=_compiler_params(),
            )(*args)
            return out[:N] if N_pad != N else out

        # --- reduction == 'sum' / 'mean' -------------------------------------
        if weighted:
            kernel = _mse_partial_weighted_kernel
            in_specs = [pred_spec, targ_spec, w_spec]
            args = (preds, targs, w)
        else:
            kernel = _mse_partial_kernel
            in_specs = [pred_spec, targ_spec]
            args = (preds, targs)

        partials = pl.pallas_call(
            kernel,
            out_shape=jax.ShapeDtypeStruct((n_tiles, 1), jnp.float32),
            grid_spec=pltpu.PrefetchScalarGridSpec(
                num_scalar_prefetch=0,
                grid=grid,
                in_specs=in_specs,
                out_specs=pl.BlockSpec(
                    (1, 1), lambda i: (i, 0), memory_space=pltpu.SMEM),
            ),
            compiler_params=_compiler_params(),
        )(*args)

        total = jnp.sum(partials)                       # tiny final reduce in JAX
        if self.reduction == "mean":
            total = total * jnp.float32(1.0 / (N * D))  # mean over original elems
        return total.astype(predictions.dtype)


# ---------------------------------------------------------------------------
# Demo / self-check
# ---------------------------------------------------------------------------
if __name__ == "__main__":
    key = jax.random.PRNGKey(0)
    k1, k2, k3 = jax.random.split(key, 3)

    def ref(pred, targ, w, reduction):
        sq = (pred - targ) ** 2
        if w is not None:
            sq = sq * w.reshape(-1, 1)
        if reduction == "none":
            return sq
        if reduction == "sum":
            return jnp.sum(sq)
        return jnp.mean(sq)

    ok = True
    # (12, 128) exercises the batch-padding path; (64, 256) the plain path.
    for (N, D) in ((12, 128), (64, 256)):
        predictions = jax.random.normal(k1, (N, D), dtype=jnp.float32)
        targets = jax.random.normal(k2, (N, D), dtype=jnp.float32)
        weight = jax.random.uniform(k3, (N,), dtype=jnp.float32) + 0.5

        for reduction in ("mean", "sum", "none"):
            for w in (weight, None):
                loss_fn = CustomMSELoss(reduction=reduction, weight=w)
                out = jax.block_until_ready(loss_fn(predictions, targets))
                expected = ref(predictions, targets, w, reduction)
                if not jnp.allclose(out, expected, rtol=1e-5, atol=1e-5):
                    ok = False
                    print(f"MISMATCH N={N} D={D} reduction={reduction} "
                          f"weighted={w is not None}")

    if ok:
        print("KERNEL_OK")
</pallas_src>

<mosaic_0001>
module attributes {stable_mosaic.version = 11 : i64} {
  func.func @_mse_partial_weighted_kernel(%arg0: i32, %arg1: memref<16x128xf32, #tpu.memory_space<vmem>>, %arg2: memref<16x128xf32, #tpu.memory_space<vmem>>, %arg3: memref<16x1xf32, #tpu.memory_space<vmem>>, %arg4: memref<1x1xf32, #tpu.memory_space<smem>>) attributes {dimension_semantics = [#tpu.dimension_semantics<parallel>], iteration_bounds = array<i64: 1>, scalar_prefetch = 0 : i64, scratch_operands = 0 : i64, tpu.core_type = #tpu.core_type<tc>, window_params = [{transform_indices = @transform_0, window_bounds = array<i64: 16, 128>}, {transform_indices = @transform_1, window_bounds = array<i64: 16, 128>}, {transform_indices = @transform_2, window_bounds = array<i64: 16, 1>}, {transform_indices = @transform_3, window_bounds = array<i64: 1, 1>}]} {
    %c0 = arith.constant 0 : index
    %c0_0 = arith.constant 0 : index
    %0 = vector.load %arg1[%c0, %c0_0] : memref<16x128xf32, #tpu.memory_space<vmem>>, vector<16x128xf32>
    %c0_1 = arith.constant 0 : index
    %c0_2 = arith.constant 0 : index
    %1 = vector.load %arg2[%c0_1, %c0_2] : memref<16x128xf32, #tpu.memory_space<vmem>>, vector<16x128xf32>
    %2 = arith.subf %0, %1 : vector<16x128xf32>
    %3 = arith.mulf %2, %2 : vector<16x128xf32>
    %c0_3 = arith.constant 0 : index
    %c0_4 = arith.constant 0 : index
    %4 = vector.load %arg3[%c0_3, %c0_4] : memref<16x1xf32, #tpu.memory_space<vmem>>, vector<16x1xf32>
    %5 = vector.broadcast %4 : vector<16x1xf32> to vector<16x128xf32>
    %6 = arith.mulf %3, %5 : vector<16x128xf32>
    %7 = vector.shape_cast %6 : vector<16x128xf32> to vector<1x16x128xf32>
    %cst = arith.constant dense<0.000000e+00> : vector<1xf32>
    %8 = vector.multi_reduction <add>, %7, %cst [1, 2] : vector<1x16x128xf32> to vector<1xf32>
    %9 = vector.shape_cast %8 : vector<1xf32> to vector<1x1x1xf32>
    %10 = vector.extract %9[0, 0, 0] : f32 from vector<1x1x1xf32>
    %c0_5 = arith.constant 0 : index
    %c0_6 = arith.constant 0 : index
    %11 = memref.load %arg4[%c0_5, %c0_6] : memref<1x1xf32, #tpu.memory_space<smem>>
    memref.store %10, %arg4[%c0_5, %c0_6] : memref<1x1xf32, #tpu.memory_space<smem>>
    return
  }
  func.func @transform_0(%arg0: i32) -> (i32, i32) {
    %c0_i32 = arith.constant 0 : i32
    %c0_i32_0 = arith.constant 0 : i32
    return %arg0, %c0_i32 : i32, i32
  }
  func.func @transform_1(%arg0: i32) -> (i32, i32) {
    %c0_i32 = arith.constant 0 : i32
    %c0_i32_0 = arith.constant 0 : i32
    return %arg0, %c0_i32 : i32, i32
  }
  func.func @transform_2(%arg0: i32) -> (i32, i32) {
    %c0_i32 = arith.constant 0 : i32
    %c0_i32_0 = arith.constant 0 : i32
    return %arg0, %c0_i32 : i32, i32
  }
  func.func @transform_3(%arg0: i32) -> (i32, i32) {
    %c0_i32 = arith.constant 0 : i32
    %c0_i32_0 = arith.constant 0 : i32
    return %arg0, %c0_i32 : i32, i32
  }
}

</mosaic_0001>

<llo_original>
// kernel: tpu_custom_call.1
$region0: #{tpu_custom_call.1}
  #allocation0 [shape = 'u32[]', space=smem, size = 0x4, offset = 0x4, fixed_abs, tag = 'smem constant byte address 0x4 - core index']
  #allocation1 [shape = 'u32[144,128]{1,0:T(1,128)}', space=vmem, size = 0x12000, scoped, tag = 'internal scratch']
  %s0 = inlined_call_operand.vmem [shape: f32[16,128], index: 0, kind: input, shape index: {}]
  %s1 = inlined_call_operand.hbm [shape: f32[16,128], index: 1, kind: input, shape index: {}]
  %s2 = inlined_call_operand.vmem [shape: f32[16,1], index: 2, kind: input, shape index: {}]
  %s3 = inlined_call_operand.hbm [shape: f32[1,1], index: 3, kind: output, shape index: {}]
  %s4 = sld [smem:[#allocation0]]
  $region26: #{tpu_custom_call.1} parent=0
    _
  %s6 = ssub.s32 1, %s4
  %s7 = scalar_select 0, %s6, %s4
  $region1: #{tpu_custom_call.1} parent=0
    #allocation2 [shape = 'u8[8192]{0}', space=vmem, size = 0x2000, scoped, tag = 'input window, operand 1, single buffered']
    #allocation3 [shape = 's32[1]{0}', space=sflag, size = 0x4, scoped, tag = 'scoped memory for tpu_custom_call.1']
    #allocation4 [shape = 's32[1]{0}', space=sflag, size = 0x4, scoped, tag = 'scoped memory for tpu_custom_call.1']
    #allocation5 [shape = 'u8[512]{0}', space=smem, size = 0x200, scoped, tag = 'output window, operand 0, single buffered']
    %8 = vsyncpa [#allocation3], 0
    %9 = vsyncpa [#allocation4], 0
    // Predicated region
    $region2: #{tpu_custom_call.1} parent=1 // pred_check
      _
    $region3: #{tpu_custom_call.1} parent=1 // pred_check_branch
      %11 = sbr.rel (0) target = $region5
    $region4: #{tpu_custom_call.1} parent=1 // pred_region
      _
    $region5: #{tpu_custom_call.1} parent=1 // pred_fallthru
      _
    // Predicated region
    $region6: #{tpu_custom_call.1} parent=1 // pred_check
      _
    $region7: #{tpu_custom_call.1} parent=1 // pred_check_branch
      %13 = sbr.rel (0) target = $region9
    $region8: #{tpu_custom_call.1} parent=1 // pred_region
      %s15 = ssub.s32 256, 256
      %16 = vsyncadd [#allocation3], %s15
      %s17 = sshll.u32 [#allocation2], 4
      %s18 = int_to_ptr.vmem [resolvable:$true] %s17
      %23 = dma.hbm_to_vmem [thread:$0]  %s1, 256, %s18, [#allocation3], 128, 128, 8
    $region9: #{tpu_custom_call.1} parent=1 // pred_fallthru
      _
    // Predicated region
    $region10: #{tpu_custom_call.1} parent=1 // pred_check
      _
    $region11: #{tpu_custom_call.1} parent=1 // pred_check_branch
      %25 = sbr.rel (0) target = $region13
    $region12: #{tpu_custom_call.1} parent=1 // pred_region
      _
    $region13: #{tpu_custom_call.1} parent=1 // pred_fallthru
      _
    // Predicated region
    $region14: #{tpu_custom_call.1} parent=1 // pred_check
      _
    $region15: #{tpu_custom_call.1} parent=1 // pred_check_branch
      %27 = sbr.rel (0) target = $region17
    $region16: #{tpu_custom_call.1} parent=1 // pred_region
      %28 = dma.done [#allocation3], 256
    $region17: #{tpu_custom_call.1} parent=1 // pred_fallthru
      _
    %v29 = vld [vmem:[%s0] sm:$0xff]
    %v30 = vld [vmem:[%s0 + $0x8] sm:$0xff]
    %v31 = vld [vmem:[#allocation2] sm:$0xff]
    %v32 = vld [vmem:[#allocation2 + $0x8] sm:$0xff]
    %v33 = vsub.f32 %v29, %v31
    %v34 = vsub.f32 %v30, %v32
    %v35 = vmul.f32 %v33, %v33
    %v36 = vmul.f32 %v34, %v34
    %v37 = vld [vmem:[%s2] sm:$0xff]
    %v38 = vld [vmem:[%s2 + $0x8] sm:$0xff]
    %40 = vset.pattern.permute.xlu0 0
    %41 = vperm.xlu0 %40, %v37
    %v42 = vpop.permute.xlu0 %41
    %45 = vset.pattern.permute.xlu0 0
    %46 = vperm.xlu0 %45, %v38
    %v47 = vpop.permute.xlu0 %46
    %v49 = vmul.f32 %v35, %v42
    %v50 = vmul.f32 %v36, %v47
    %v51 = vadd.f32 %v49, %v50
    %52 = vadd.xlane.f32.xlu0 %v51
    %v53 = vpop.xlane.xlu0 %52
    %v54 = vrot.slane %v53, 4
    %v55 = vadd.f32 %v53, %v54
    %v56 = vrot.slane %v55, 2
    %v57 = vadd.f32 %v55, %v56
    %v58 = vrot.slane %v57, 1
    %v59 = vadd.f32 %v57, %v58
    %s60 = vtos %v59
    %s61 = scalar_lea.smem [#allocation5], 0
    %62 = sst [smem:[%s61]] %s60
    // Predicated region
    $region18: #{tpu_custom_call.1} parent=1 // pred_check
      _
    $region19: #{tpu_custom_call.1} parent=1 // pred_check_branch
      %64 = sbr.rel (0) target = $region21
    $region20: #{tpu_custom_call.1} parent=1 // pred_region
      %s66 = ssub.s32 16, 16
      %67 = vsyncadd [#allocation4], %s66
      %70 = dma.smem_to_hbm [#allocation5], 16, %s3, [#allocation4]
    $region21: #{tpu_custom_call.1} parent=1 // pred_fallthru
      _
    // Predicated region
    $region22: #{tpu_custom_call.1} parent=1 // pred_check
      _
    $region23: #{tpu_custom_call.1} parent=1 // pred_check_branch
      %72 = sbr.rel (0) target = $region25
    $region24: #{tpu_custom_call.1} parent=1 // pred_region
      %73 = dma.done [#allocation4], 16
    $region25: #{tpu_custom_call.1} parent=1 // pred_fallthru
      _
    %74 = sfence
    %75 = vsyncpa [#allocation3], 1
    %76 = vsyncpa [#allocation4], 1

</llo_original>
